<compile_context>
chip_gen: v7x
topology: tpu7x:2x2x1
jax: 0.10.0
libtpu: 0.0.40
codegen_flags: <defaults>
</compile_context>

<pallas_src>
import functools

import jax
import jax.numpy as jnp
from jax.experimental import pallas as pl
from jax.experimental.pallas import tpu as pltpu


def _attn_head_kernel(x_ref, wq_ref, wk_ref, wv_ref, o_ref, *, scale):
    """Grid point = (batch b, head h).

    x_ref : (1, N, C)     bf16  (same block reused for every head of a batch)
    wq_ref: (1, C, hd)    bf16  per-head Q projection slice
    wk_ref: (1, C, hd)    bf16
    wv_ref: (1, C, hd)    bf16
    o_ref : (1, 1, N, hd) bf16  pre-projection attention output for this head
    """
    x = x_ref[0]                                                     # (N, C) bf16

    # Per-head projections: full-C contraction, f32 accumulation on the MXU.
    q = jnp.dot(x, wq_ref[0], preferred_element_type=jnp.float32)   # (N, hd) f32
    k = jnp.dot(x, wk_ref[0], preferred_element_type=jnp.float32)
    v = jnp.dot(x, wv_ref[0], preferred_element_type=jnp.float32)

    # Fuse the scale into Q (O(N*hd) VALU work instead of O(N*N)).
    qb = (q * scale).astype(jnp.bfloat16)
    kb = k.astype(jnp.bfloat16)
    vb = v.astype(jnp.bfloat16)

    # Scores: contract the head dim of both operands (no explicit K transpose).
    s = jax.lax.dot_general(qb, kb, (((1,), (1,)), ((), ())),
                            preferred_element_type=jnp.float32)      # (N, N) f32

    # Softmax in f32 (max-subtracted); reciprocal on the EUP slot.
    s = s - jnp.max(s, axis=-1, keepdims=True)
    p = jnp.exp(s)
    p = p * pl.reciprocal(jnp.sum(p, axis=-1, keepdims=True), approx=True)
    # attn_drop is identity (p=0.0)

    out = jnp.dot(p.astype(jnp.bfloat16), vb,
                  preferred_element_type=jnp.float32)                # (N, hd) f32
    o_ref[0, 0] = out.astype(o_ref.dtype)


def _proj_kernel(a_ref, wp_ref, bp_ref, o_ref, acc_ref):
    """Grid point = (batch b, head h); h is the reduction axis.

    a_ref  : (1, 1, N, hd) bf16  per-head attention output
    wp_ref : (1, hd, C)    bf16  per-head slice of the output projection
    bp_ref : (1, C)        f32   projection bias
    o_ref  : (1, N, C)     out dtype
    acc_ref: (N, C)        f32 VMEM accumulator
    """
    h = pl.program_id(1)

    @pl.when(h == 0)
    def _():
        acc_ref[...] = jnp.zeros_like(acc_ref)

    acc_ref[...] += jnp.dot(a_ref[0, 0], wp_ref[0],
                            preferred_element_type=jnp.float32)

    @pl.when(h == pl.num_programs(1) - 1)
    def _():
        o_ref[0] = (acc_ref[...] + bp_ref[...]).astype(o_ref.dtype)
        # proj_drop is identity (p=0.0)


def attention_forward(x, w_qkv, w_proj, b_proj, *, num_heads):
    """x: (B, N, C); w_qkv: (C, 3C) (transpose of the PyTorch nn.Linear weight,
    columns ordered (3, H, hd)); w_proj: (C, C); b_proj: (C,)."""
    B, N, C = x.shape
    H = num_heads
    hd = C // H
    scale = hd ** (-0.5)

    # Host-side one-time weight re-arrangement so the kernels never need to
    # transpose / relayout activations. Matmul operands are cast to bf16
    # (MXU-native); all accumulation stays f32 inside the kernels.
    w3 = w_qkv.reshape(C, 3, H, hd).transpose(1, 2, 0, 3)            # (3, H, C, hd)
    wq = w3[0].astype(jnp.bfloat16)                                  # (H, C, hd)
    wk = w3[1].astype(jnp.bfloat16)
    wv = w3[2].astype(jnp.bfloat16)
    wp = w_proj.reshape(H, hd, C).astype(jnp.bfloat16)               # (H, hd, C)
    bp = b_proj.reshape(1, C).astype(jnp.float32)
    xb = x.astype(jnp.bfloat16)

    # NOTE: for production ViT shapes, pad C / hd to multiples of 128 (and N to
    # a multiple of 8) here for lane-dense, unmasked stores; the blocks below
    # always span full array dims, so any shape remains legal.

    # ---- kernel 1: fused per-(B, H) qkv-projection + attention ---------------
    attn_kernel = functools.partial(_attn_head_kernel, scale=scale)
    attn_out = pl.pallas_call(
        attn_kernel,
        out_shape=jax.ShapeDtypeStruct((B, H, N, hd), jnp.bfloat16),
        grid_spec=pltpu.PrefetchScalarGridSpec(
            num_scalar_prefetch=0,
            grid=(B, H),
            in_specs=[
                pl.BlockSpec((1, N, C), lambda b, h: (b, 0, 0)),
                pl.BlockSpec((1, C, hd), lambda b, h: (h, 0, 0)),
                pl.BlockSpec((1, C, hd), lambda b, h: (h, 0, 0)),
                pl.BlockSpec((1, C, hd), lambda b, h: (h, 0, 0)),
            ],
            out_specs=pl.BlockSpec((1, 1, N, hd), lambda b, h: (b, h, 0, 0)),
        ),
        compiler_params=pltpu.CompilerParams(
            dimension_semantics=("parallel", "parallel")),
    )(xb, wq, wk, wv)

    # ---- kernel 2: output projection, reduced over heads ---------------------
    return pl.pallas_call(
        _proj_kernel,
        out_shape=jax.ShapeDtypeStruct((B, N, C), x.dtype),
        grid_spec=pltpu.PrefetchScalarGridSpec(
            num_scalar_prefetch=0,
            grid=(B, H),
            in_specs=[
                pl.BlockSpec((1, 1, N, hd), lambda b, h: (b, h, 0, 0)),
                pl.BlockSpec((1, hd, C), lambda b, h: (h, 0, 0)),
                pl.BlockSpec((1, C), lambda b, h: (0, 0)),
            ],
            out_specs=pl.BlockSpec((1, N, C), lambda b, h: (b, 0, 0)),
            scratch_shapes=[pltpu.VMEM((N, C), jnp.float32)],
        ),
        compiler_params=pltpu.CompilerParams(
            dimension_semantics=("parallel", "arbitrary")),
    )(attn_out, wp, bp)


def attention_reference(x, w_qkv, w_proj, b_proj, *, num_heads):
    """Pure-JAX f32 reference mirroring the PyTorch forward."""
    B, N, C = x.shape
    hd = C // num_heads
    scale = hd ** (-0.5)
    qkv = x @ w_qkv                                                     # (B, N, 3C)
    qkv = qkv.reshape(B, N, 3, num_heads, hd).transpose(2, 0, 3, 1, 4)  # (3,B,H,N,hd)
    q, k, v = qkv[0], qkv[1], qkv[2]
    attn = jnp.einsum('bhnd,bhmd->bhnm', q, k) * scale
    attn = jax.nn.softmax(attn, axis=-1)
    out = jnp.einsum('bhnm,bhmd->bhnd', attn, v)
    out = out.transpose(0, 2, 1, 3).reshape(B, N, C)
    return out @ w_proj + b_proj


if __name__ == "__main__":
    # Small shapes consistent with the module: dim=32, num_heads=8 -> head_dim=4.
    B, N, C = 2, 8, 32
    num_heads = 8

    key = jax.random.PRNGKey(0)
    k_x, k_qkv, k_proj, k_bias = jax.random.split(key, 4)

    x = jax.random.normal(k_x, (B, N, C), dtype=jnp.float32)
    # Deterministic parameter init (no checkpoint load).
    w_qkv = jax.random.normal(k_qkv, (C, 3 * C), dtype=jnp.float32) * 0.05
    w_proj = jax.random.normal(k_proj, (C, C), dtype=jnp.float32) * 0.05
    b_proj = jax.random.normal(k_bias, (C,), dtype=jnp.float32) * 0.05

    out = attention_forward(x, w_qkv, w_proj, b_proj, num_heads=num_heads)
    out = jax.block_until_ready(out)

    ref = attention_reference(x, w_qkv, w_proj, b_proj, num_heads=num_heads)
    assert out.shape == (B, N, C)
    # bf16 MXU operands (f32 accumulation) -> slightly looser tolerance than f32.
    assert jnp.allclose(out, ref, atol=2e-2, rtol=2e-2), "mismatch vs reference"

    print("KERNEL_OK")
</pallas_src>

<mosaic_0001>
module attributes {stable_mosaic.version = 11 : i64} {
  func.func @_attn_head_kernel(%arg0: i32, %arg1: i32, %arg2: memref<1x8x32xbf16, #tpu.memory_space<vmem>>, %arg3: memref<1x32x4xbf16, #tpu.memory_space<vmem>>, %arg4: memref<1x32x4xbf16, #tpu.memory_space<vmem>>, %arg5: memref<1x32x4xbf16, #tpu.memory_space<vmem>>, %arg6: memref<1x1x8x4xbf16, #tpu.memory_space<vmem>>) attributes {dimension_semantics = [#tpu.dimension_semantics<parallel>, #tpu.dimension_semantics<parallel>], iteration_bounds = array<i64: 2, 8>, scalar_prefetch = 0 : i64, scratch_operands = 0 : i64, tpu.core_type = #tpu.core_type<tc>, window_params = [{transform_indices = @transform_0, window_bounds = array<i64: 1, 8, 32>}, {transform_indices = @transform_1, window_bounds = array<i64: 1, 32, 4>}, {transform_indices = @transform_2, window_bounds = array<i64: 1, 32, 4>}, {transform_indices = @transform_3, window_bounds = array<i64: 1, 32, 4>}, {transform_indices = @transform_4, window_bounds = array<i64: 1, 1, 8, 4>}]} {
    %c0 = arith.constant 0 : index
    %c0_0 = arith.constant 0 : index
    %c0_1 = arith.constant 0 : index
    %0 = vector.load %arg2[%c0, %c0_0, %c0_1] : memref<1x8x32xbf16, #tpu.memory_space<vmem>>, vector<1x8x32xbf16>
    %1 = vector.shape_cast %0 : vector<1x8x32xbf16> to vector<8x32xbf16>
    %c0_2 = arith.constant 0 : index
    %c0_3 = arith.constant 0 : index
    %c0_4 = arith.constant 0 : index
    %2 = vector.load %arg3[%c0_2, %c0_3, %c0_4] : memref<1x32x4xbf16, #tpu.memory_space<vmem>>, vector<1x32x4xbf16>
    %3 = vector.shape_cast %2 : vector<1x32x4xbf16> to vector<32x4xbf16>
    %cst = arith.constant dense<0.000000e+00> : vector<8x4xf32>
    %4 = tpu.matmul %1, %3, %cst {dimension_numbers = #tpu.dot_dimension_numbers<[1], [0], [0], [1], [0, 0, 1, 1], [], []>} : vector<8x32xbf16>, vector<32x4xbf16>, vector<8x4xf32> -> vector<8x4xf32>
    %c0_5 = arith.constant 0 : index
    %c0_6 = arith.constant 0 : index
    %c0_7 = arith.constant 0 : index
    %5 = vector.load %arg4[%c0_5, %c0_6, %c0_7] : memref<1x32x4xbf16, #tpu.memory_space<vmem>>, vector<1x32x4xbf16>
    %6 = vector.shape_cast %5 : vector<1x32x4xbf16> to vector<32x4xbf16>
    %cst_8 = arith.constant dense<0.000000e+00> : vector<8x4xf32>
    %7 = tpu.matmul %1, %6, %cst_8 {dimension_numbers = #tpu.dot_dimension_numbers<[1], [0], [0], [1], [0, 0, 1, 1], [], []>} : vector<8x32xbf16>, vector<32x4xbf16>, vector<8x4xf32> -> vector<8x4xf32>
    %c0_9 = arith.constant 0 : index
    %c0_10 = arith.constant 0 : index
    %c0_11 = arith.constant 0 : index
    %8 = vector.load %arg5[%c0_9, %c0_10, %c0_11] : memref<1x32x4xbf16, #tpu.memory_space<vmem>>, vector<1x32x4xbf16>
    %9 = vector.shape_cast %8 : vector<1x32x4xbf16> to vector<32x4xbf16>
    %cst_12 = arith.constant dense<0.000000e+00> : vector<8x4xf32>
    %10 = tpu.matmul %1, %9, %cst_12 {dimension_numbers = #tpu.dot_dimension_numbers<[1], [0], [0], [1], [0, 0, 1, 1], [], []>} : vector<8x32xbf16>, vector<32x4xbf16>, vector<8x4xf32> -> vector<8x4xf32>
    %cst_13 = arith.constant 5.000000e-01 : f32
    %11 = vector.broadcast %cst_13 : f32 to vector<8x4xf32>
    %12 = arith.mulf %4, %11 : vector<8x4xf32>
    %13 = arith.truncf %12 : vector<8x4xf32> to vector<8x4xbf16>
    %14 = arith.truncf %7 : vector<8x4xf32> to vector<8x4xbf16>
    %15 = arith.truncf %10 : vector<8x4xf32> to vector<8x4xbf16>
    %cst_14 = arith.constant dense<0.000000e+00> : vector<8x8xf32>
    %16 = tpu.matmul %13, %14, %cst_14 {dimension_numbers = #tpu.dot_dimension_numbers<[1], [1], [0], [0], [0, 0, 1, 0], [], []>} : vector<8x4xbf16>, vector<8x4xbf16>, vector<8x8xf32> -> vector<8x8xf32>
    %cst_15 = arith.constant dense<0xFF800000> : vector<8xf32>
    %17 = vector.multi_reduction <maximumf>, %16, %cst_15 [1] : vector<8x8xf32> to vector<8xf32>
    %18 = vector.shape_cast %17 : vector<8xf32> to vector<8x1xf32>
    %19 = vector.broadcast %18 : vector<8x1xf32> to vector<8x8xf32>
    %20 = arith.subf %16, %19 : vector<8x8xf32>
    %21 = math.exp %20 : vector<8x8xf32>
    %cst_16 = arith.constant dense<0.000000e+00> : vector<8xf32>
    %22 = vector.multi_reduction <add>, %21, %cst_16 [1] : vector<8x8xf32> to vector<8xf32>
    %23 = vector.shape_cast %22 : vector<8xf32> to vector<8x1xf32>
    %24 = tpu.reciprocal %23 {approx = true} : vector<8x1xf32> -> vector<8x1xf32>
    %25 = vector.broadcast %24 : vector<8x1xf32> to vector<8x8xf32>
    %26 = arith.mulf %21, %25 : vector<8x8xf32>
    %27 = arith.truncf %26 : vector<8x8xf32> to vector<8x8xbf16>
    %cst_17 = arith.constant dense<0.000000e+00> : vector<8x4xf32>
    %28 = tpu.matmul %27, %15, %cst_17 {dimension_numbers = #tpu.dot_dimension_numbers<[1], [0], [0], [1], [0, 0, 1, 1], [], []>} : vector<8x8xbf16>, vector<8x4xbf16>, vector<8x4xf32> -> vector<8x4xf32>
    %29 = arith.truncf %28 : vector<8x4xf32> to vector<8x4xbf16>
    %c0_18 = arith.constant 0 : index
    %c0_19 = arith.constant 0 : index
    %c0_20 = arith.constant 0 : index
    %c0_21 = arith.constant 0 : index
    %30 = vector.load %arg6[%c0_18, %c0_19, %c0_20, %c0_21] : memref<1x1x8x4xbf16, #tpu.memory_space<vmem>>, vector<1x1x8x4xbf16>
    %31 = vector.shape_cast %30 : vector<1x1x8x4xbf16> to vector<8x4xbf16>
    %32 = vector.shape_cast %29 : vector<8x4xbf16> to vector<1x1x8x4xbf16>
    tpu.vector_store %arg6[%c0_18, %c0_19, %c0_20, %c0_21], %32 {strides = array<i32>} : memref<1x1x8x4xbf16, #tpu.memory_space<vmem>>, vector<1x1x8x4xbf16>,
    return
  }
  func.func @transform_0(%arg0: i32, %arg1: i32) -> (i32, i32, i32) {
    %c0_i32 = arith.constant 0 : i32
    %c0_i32_0 = arith.constant 0 : i32
    %c0_i32_1 = arith.constant 0 : i32
    return %arg0, %c0_i32, %c0_i32_0 : i32, i32, i32
  }
  func.func @transform_1(%arg0: i32, %arg1: i32) -> (i32, i32, i32) {
    %c0_i32 = arith.constant 0 : i32
    %c0_i32_0 = arith.constant 0 : i32
    %c0_i32_1 = arith.constant 0 : i32
    return %arg1, %c0_i32, %c0_i32_0 : i32, i32, i32
  }
  func.func @transform_2(%arg0: i32, %arg1: i32) -> (i32, i32, i32) {
    %c0_i32 = arith.constant 0 : i32
    %c0_i32_0 = arith.constant 0 : i32
    %c0_i32_1 = arith.constant 0 : i32
    return %arg1, %c0_i32, %c0_i32_0 : i32, i32, i32
  }
  func.func @transform_3(%arg0: i32, %arg1: i32) -> (i32, i32, i32) {
    %c0_i32 = arith.constant 0 : i32
    %c0_i32_0 = arith.constant 0 : i32
    %c0_i32_1 = arith.constant 0 : i32
    return %arg1, %c0_i32, %c0_i32_0 : i32, i32, i32
  }
  func.func @transform_4(%arg0: i32, %arg1: i32) -> (i32, i32, i32, i32) {
    %c0_i32 = arith.constant 0 : i32
    %c0_i32_0 = arith.constant 0 : i32
    %c0_i32_1 = arith.constant 0 : i32
    return %arg0, %arg1, %c0_i32, %c0_i32_0 : i32, i32, i32, i32
  }
}

</mosaic_0001>

<llo_original>
// kernel: tpu_custom_call.1
$region0: #{tpu_custom_call.1}
  #allocation0 [shape = 'u32[]', space=smem, size = 0x4, offset = 0x4, fixed_abs, tag = 'smem constant byte address 0x4 - core index']
  #allocation1 [shape = 'u32[144,128]{1,0:T(1,128)}', space=vmem, size = 0x12000, scoped, tag = 'internal scratch']
  %s0 = inlined_call_operand.vmem [shape: bf16[2,8,32], index: 0, kind: input, shape index: {}]
  %s1 = inlined_call_operand.vmem [shape: bf16[8,32,4], index: 1, kind: input, shape index: {}]
  %s2 = inlined_call_operand.vmem [shape: bf16[8,32,4], index: 2, kind: input, shape index: {}]
  %s3 = inlined_call_operand.vmem [shape: bf16[8,32,4], index: 3, kind: input, shape index: {}]
  %s4 = inlined_call_operand.vmem [shape: bf16[2,8,8,4], index: 4, kind: output, shape index: {}]
  %s5 = sld [smem:[#allocation0]]
  $region49: #{tpu_custom_call.1} parent=0
    _
  %s7 = ssub.s32 1, %s5
  %s8 = scalar_select 0, %s7, %s5
  loop: start=0, step=1, limit=18
  $region2: #{tpu_custom_call.1} parent=0 // loop_pre_header
    _
  $region3: #{tpu_custom_call.1} parent=0 // loop_header
    %s10 = sphi 0, %s14
    %p11 = scmp.ge.s32.totalorder %s10, 18
    %s17 = sphi 0, %s29
    %s18 = sphi 0, %s25
    %s19 = sphi 0, %s17
    %s20 = sphi 0, %s18
    %s21 = sphi 0, %s19
    %s22 = sphi 0, %s20
    %s32 = sphi 0, %s34
    %s35 = sphi 0, %s32
    %s36 = sphi 0, %s35
    %s52 = sphi 0, %s36
    %s58 = sphi 0, %s60
    %s61 = sphi 0, %s58
    %s62 = sphi 0, %s61
    %s78 = sphi 0, %s62
    %s84 = sphi 0, %s86
    %s87 = sphi 0, %s84
    %s88 = sphi 0, %s87
    %s104 = sphi 0, %s88
    %s110 = sphi 0, %s112
    %s113 = sphi 0, %s110
    %s114 = sphi 0, %s113
    %s130 = sphi 0, %s114
    %s138 = sphi 0, %s140
    %s141 = sphi 0, %s138
    %s142 = sphi 0, %s141
    %s158 = sphi 0, %s142
  $region4: #{tpu_custom_call.1} parent=0 // loop_header_branch
    %13 = sbr.rel (%p11) target = $region8
  $region5: #{tpu_custom_call.1} parent=0 // loop_body
    %s15 = ssub.s32 %s10, 1
    %s16 = ssub.s32 %s10, 2
    %s23 = sadd.s32 1, %s18
    %p24 = scmp.ge.s32.totalorder %s23, 8
    %s25 = scalar_select %p24, 0, %s23
    %s26 = sadd.s32 1, %s17
    %s27 = scalar_select %p24, %s26, %s17
    %p28 = scmp.ge.s32.totalorder %s27, 2
    %s29 = scalar_select %p28, 0, %s27
    %s30 = ssub.s32 %s17, %s29
    %p31 = scmp.eq.s32.totalorder %s30, 0
    %s33 = sadd.s32 %s32, 1
    %s34 = scalar_select %p31, %s32, %s33
    %p37 = pneg %p31
    %p38 = scmp.eq.s32.totalorder %s10, 15
    %p39 = por %p37, %p38
    %p40 = scmp.ne.s32.totalorder %s32, %s35
    %p41 = scmp.eq.s32.totalorder %s10, 0
    %p42 = por %p40, %p41
    %p43 = scmp.ne.s32.totalorder %s32, %s35
    %p44 = scmp.eq.s32.totalorder %s15, 15
    %p45 = por %p43, %p44
    %p46 = scmp.ne.s32.totalorder %s35, %s36
    %p47 = scmp.eq.s32.totalorder %s15, 0
    %p48 = por %p46, %p47
    %p49 = scmp.ne.s32.totalorder %s35, %s36
    %p50 = scmp.eq.s32.totalorder %s16, 15
    %p51 = por %p49, %p50
    %p53 = scmp.ne.s32.totalorder %s36, %s52
    %p54 = scmp.eq.s32.totalorder %s16, 0
    %p55 = por %p53, %p54
    %s56 = ssub.s32 %s18, %s25
    %p57 = scmp.eq.s32.totalorder %s56, 0
    %s59 = sadd.s32 %s58, 1
    %s60 = scalar_select %p57, %s58, %s59
    %p63 = pneg %p57
    %p64 = scmp.eq.s32.totalorder %s10, 15
    %p65 = por %p63, %p64
    %p66 = scmp.ne.s32.totalorder %s58, %s61
    %p67 = scmp.eq.s32.totalorder %s10, 0
    %p68 = por %p66, %p67
    %p69 = scmp.ne.s32.totalorder %s58, %s61
    %p70 = scmp.eq.s32.totalorder %s15, 15
    %p71 = por %p69, %p70
    %p72 = scmp.ne.s32.totalorder %s61, %s62
    %p73 = scmp.eq.s32.totalorder %s15, 0
    %p74 = por %p72, %p73
    %p75 = scmp.ne.s32.totalorder %s61, %s62
    %p76 = scmp.eq.s32.totalorder %s16, 15
    %p77 = por %p75, %p76
    %p79 = scmp.ne.s32.totalorder %s62, %s78
    %p80 = scmp.eq.s32.totalorder %s16, 0
    %p81 = por %p79, %p80
    %s82 = ssub.s32 %s18, %s25
    %p83 = scmp.eq.s32.totalorder %s82, 0
    %s85 = sadd.s32 %s84, 1
    %s86 = scalar_select %p83, %s84, %s85
    %p89 = pneg %p83
    %p90 = scmp.eq.s32.totalorder %s10, 15
    %p91 = por %p89, %p90
    %p92 = scmp.ne.s32.totalorder %s84, %s87
    %p93 = scmp.eq.s32.totalorder %s10, 0
    %p94 = por %p92, %p93
    %p95 = scmp.ne.s32.totalorder %s84, %s87
    %p96 = scmp.eq.s32.totalorder %s15, 15
    %p97 = por %p95, %p96
    %p98 = scmp.ne.s32.totalorder %s87, %s88
    %p99 = scmp.eq.s32.totalorder %s15, 0
    %p100 = por %p98, %p99
    %p101 = scmp.ne.s32.totalorder %s87, %s88
    %p102 = scmp.eq.s32.totalorder %s16, 15
    %p103 = por %p101, %p102
    %p105 = scmp.ne.s32.totalorder %s88, %s104
    %p106 = scmp.eq.s32.totalorder %s16, 0
    %p107 = por %p105, %p106
    %s108 = ssub.s32 %s18, %s25
    %p109 = scmp.eq.s32.totalorder %s108, 0
    %s111 = sadd.s32 %s110, 1
    %s112 = scalar_select %p109, %s110, %s111
    %p115 = pneg %p109
    %p116 = scmp.eq.s32.totalorder %s10, 15
    %p117 = por %p115, %p116
    %p118 = scmp.ne.s32.totalorder %s110, %s113
    %p119 = scmp.eq.s32.totalorder %s10, 0
    %p120 = por %p118, %p119
    %p121 = scmp.ne.s32.totalorder %s110, %s113
    %p122 = scmp.eq.s32.totalorder %s15, 15
    %p123 = por %p121, %p122
    %p124 = scmp.ne.s32.totalorder %s113, %s114
    %p125 = scmp.eq.s32.totalorder %s15, 0
    %p126 = por %p124, %p125
    %p127 = scmp.ne.s32.totalorder %s113, %s114
    %p128 = scmp.eq.s32.totalorder %s16, 15
    %p129 = por %p127, %p128
    %p131 = scmp.ne.s32.totalorder %s114, %s130
    %p132 = scmp.eq.s32.totalorder %s16, 0
    %p133 = por %p131, %p132
    %s134 = ssub.s32 %s17, %s29
    %s135 = ssub.s32 %s18, %s25
    %s136 = sor.u32 %s134, %s135
    %p137 = scmp.eq.s32.totalorder %s136, 0
    %s139 = sadd.s32 %s138, 1
    %s140 = scalar_select %p137, %s138, %s139
    %p143 = pneg %p137
    %p144 = scmp.eq.s32.totalorder %s10, 15
    %p145 = por %p143, %p144
    %p146 = scmp.ne.s32.totalorder %s138, %s141
    %p147 = scmp.eq.s32.totalorder %s10, 0
    %p148 = por %p146, %p147
    %p149 = scmp.ne.s32.totalorder %s138, %s141
    %p150 = scmp.eq.s32.totalorder %s15, 15
    %p151 = por %p149, %p150
    %p152 = scmp.ne.s32.totalorder %s141, %s142
    %p153 = scmp.eq.s32.totalorder %s15, 0
    %p154 = por %p152, %p153
    %p155 = scmp.ne.s32.totalorder %s141, %s142
    %p156 = scmp.eq.s32.totalorder %s16, 15
    %p157 = por %p155, %p156
    %p159 = scmp.ne.s32.totalorder %s142, %s158
    %p160 = scmp.eq.s32.totalorder %s16, 0
    %p161 = por %p159, %p160
    %p162 = scmp.le.s32.totalorder 1, %s10
    %p163 = scmp.lt.s32.totalorder %s10, 17
    %p164 = pnand %p162, %p163
    %p165 = pneg %p164
    // Predicated region
    $region9: #{tpu_custom_call.1} parent=5 // pred_check
      _
    $region10: #{tpu_custom_call.1} parent=5 // pred_check_branch
      %167 = sbr.rel (%p164) target = $region12
    $region11: #{tpu_custom_call.1} parent=5 // pred_region
      %s168 = ssub.s32 %s10, 1
    $region12: #{tpu_custom_call.1} parent=5 // pred_fallthru
      _
    %p169 = scmp.lt.s32.totalorder %s10, 16
    // Predicated region
    $region13: #{tpu_custom_call.1} parent=5 // pred_check
      %p170 = pneg %p169
    $region14: #{tpu_custom_call.1} parent=5 // pred_check_branch
      %172 = sbr.rel (%p170) target = $region16
    $region15: #{tpu_custom_call.1} parent=5 // pred_region
      // Predicated region
      $region17: #{tpu_custom_call.1} parent=15 // pred_check
        %p173 = pneg %p42
      $region18: #{tpu_custom_call.1} parent=15 // pred_check_branch
        %175 = sbr.rel (%p173) target = $region20
      $region19: #{tpu_custom_call.1} parent=15 // pred_region
        %p176 = scmp.lt.s32.totalorder %s17, 1
        %s177 = scalar_select %p176, %s17, 1
        %s178 = smul.addr %s177, 4
        %s179 = scalar_lea.vmem %s0, %s178
      $region20: #{tpu_custom_call.1} parent=15 // pred_fallthru
        _
      // Predicated region
      $region21: #{tpu_custom_call.1} parent=15 // pred_check
        %p180 = pneg %p68
      $region22: #{tpu_custom_call.1} parent=15 // pred_check_branch
        %182 = sbr.rel (%p180) target = $region24
      $region23: #{tpu_custom_call.1} parent=15 // pred_region
        %p183 = scmp.lt.s32.totalorder %s18, 7
        %s184 = scalar_select %p183, %s18, 7
        %s185 = smul.addr %s184, 4
        %s186 = smul.addr %s185, 4
        %s187 = scalar_lea.vmem %s1, %s186
      $region24: #{tpu_custom_call.1} parent=15 // pred_fallthru
        _
      // Predicated region
      $region25: #{tpu_custom_call.1} parent=15 // pred_check
        %p188 = pneg %p94
      $region26: #{tpu_custom_call.1} parent=15 // pred_check_branch
        %190 = sbr.rel (%p188) target = $region28
      $region27: #{tpu_custom_call.1} parent=15 // pred_region
        %p191 = scmp.lt.s32.totalorder %s18, 7
        %s192 = scalar_select %p191, %s18, 7
        %s193 = smul.addr %s192, 4
        %s194 = smul.addr %s193, 4
        %s195 = scalar_lea.vmem %s2, %s194
      $region28: #{tpu_custom_call.1} parent=15 // pred_fallthru
        _
      // Predicated region
      $region29: #{tpu_custom_call.1} parent=15 // pred_check
        %p196 = pneg %p120
      $region30: #{tpu_custom_call.1} parent=15 // pred_check_branch
        %198 = sbr.rel (%p196) target = $region32
      $region31: #{tpu_custom_call.1} parent=15 // pred_region
        %p199 = scmp.lt.s32.totalorder %s18, 7
        %s200 = scalar_select %p199, %s18, 7
        %s201 = smul.addr %s200, 4
        %s202 = smul.addr %s201, 4
        %s203 = scalar_lea.vmem %s3, %s202
      $region32: #{tpu_custom_call.1} parent=15 // pred_fallthru
        _
    $region16: #{tpu_custom_call.1} parent=5 // pred_fallthru
      _
    %p204 = scmp.le.s32.totalorder 1, %s10
    %p205 = scmp.lt.s32.totalorder %s10, 17
    %p206 = pnand %p204, %p205
    %p207 = pneg %p206
    // Predicated region
    $region33: #{tpu_custom_call.1} parent=5 // pred_check
      _
    $region34: #{tpu_custom_call.1} parent=5 // pred_check_branch
      %209 = sbr.rel (%p206) target = $region36
    $region35: #{tpu_custom_call.1} parent=5 // pred_region
      %s210 = ssub.s32 %s10, 1
      %p211 = scmp.lt.s32.totalorder %s19, 1
      %s212 = scalar_select %p211, %s19, 1
      %s213 = smul.addr %s212, 4
      %s214 = scalar_lea.vmem %s0, %s213
      %p215 = pneg %p48
      %p216 = pneg %p45
      %p217 = scmp.lt.s32.totalorder %s20, 7
      %s218 = scalar_select %p217, %s20, 7
      %s219 = smul.addr %s218, 4
      %s220 = smul.addr %s219, 4
      %s221 = scalar_lea.vmem %s1, %s220
      %p222 = pneg %p74
      %p223 = pneg %p71
      %p224 = scmp.lt.s32.totalorder %s20, 7
      %s225 = scalar_select %p224, %s20, 7
      %s226 = smul.addr %s225, 4
      %s227 = smul.addr %s226, 4
      %s228 = scalar_lea.vmem %s2, %s227
      %p229 = pneg %p100
      %p230 = pneg %p97
      %p231 = scmp.lt.s32.totalorder %s20, 7
      %s232 = scalar_select %p231, %s20, 7
      %s233 = smul.addr %s232, 4
      %s234 = smul.addr %s233, 4
      %s235 = scalar_lea.vmem %s3, %s234
      %p236 = pneg %p126
      %p237 = pneg %p123
      %p238 = pneg %p154
      %p239 = pneg %p151
      %p240 = scmp.lt.s32.totalorder %s19, 1
      %s241 = scalar_select %p240, %s19, 1
      %p242 = scmp.lt.s32.totalorder %s20, 7
      %s243 = scalar_select %p242, %s20, 7
      %s244 = smul.addr %s241, 8
      %s245 = sadd.s32 %s243, %s244
      %s246 = smul.addr %s245, 4
      %s247 = scalar_lea.vmem %s4, %s246
      %p248 = scmp.lt.s32.totalorder %s19, 1
      %s249 = scalar_select %p248, %s19, 1
      %s250 = smul.addr %s249, 4
      %s251 = scalar_lea.vmem %s0, %s250
      %p252 = scmp.lt.s32.totalorder %s20, 7
      %s253 = scalar_select %p252, %s20, 7
      %s254 = smul.addr %s253, 4
      %s255 = smul.addr %s254, 4
      %s256 = scalar_lea.vmem %s1, %s255
      %p257 = scmp.lt.s32.totalorder %s20, 7
      %s258 = scalar_select %p257, %s20, 7
      %s259 = smul.addr %s258, 4
      %s260 = smul.addr %s259, 4
      %s261 = scalar_lea.vmem %s2, %s260
      %p262 = scmp.lt.s32.totalorder %s20, 7
      %s263 = scalar_select %p262, %s20, 7
      %s264 = smul.addr %s263, 4
      %s265 = smul.addr %s264, 4
      %s266 = scalar_lea.vmem %s3, %s265
      %p267 = scmp.lt.s32.totalorder %s19, 1
      %s268 = scalar_select %p267, %s19, 1
      %p269 = scmp.lt.s32.totalorder %s20, 7
      %s270 = scalar_select %p269, %s20, 7
      %s271 = smul.addr %s268, 8
      %s272 = sadd.s32 %s270, %s271
      %s273 = smul.addr %s272, 4
      %s274 = scalar_lea.vmem %s4, %s273
      %v276 = vld [vmem:[%s251] sm:$0xf]
      %v277 = vld [vmem:[%s256] sm:$0xf]
      %v278 = vld [vmem:[%s256 + $0x4] sm:$0xf]
      %v279 = vld [vmem:[%s256 + $0x8] sm:$0xf]
      %v280 = vld [vmem:[%s256 + $0xc] sm:$0xf]
      %v285 = vunpack.c.l.b16 %v277
      %v286 = vunpack.c.l.b16 %v278
      %v287 = vunpack.c.l.b16 %v279
      %v288 = vunpack.c.l.b16 %v280
      %v289 = vpack.c.b16 %v286, %v285
      %v290 = vpack.c.b16 %v288, %v287
      %vm293 = vcmask 261120
      %v295 = vsel %vm293, %v276, 0
      %297 = vmatprep.subr.bf16.mxu0 0
      %298 = vmatpush1.bf16.msra.mxu0 %v289
      %299 = vmatprep.subr.bf16.mxu0 0
      %300 = vmatpush1.bf16.msra.mxu0 %v290
      %301 = vmatprep.subr.bf16.mxu0 0
      %302 = vmatpush1.bf16.msra.mxu0 0
      %303 = vmatprep.subr.bf16.mxu0 0
      %304 = vmatpush1.bf16.msra.mxu0 0
      %305 = vmatprep.subr.bf16.mxu0 0
      %306 = vmatpush1.bf16.msra.mxu0 0
      %307 = vmatprep.subr.bf16.mxu0 0
      %308 = vmatpush1.bf16.msra.mxu0 0
      %309 = vmatprep.subr.bf16.mxu0 0
      %310 = vmatpush1.bf16.msra.mxu0 0
      %311 = vmatprep.subr.bf16.mxu0 0
      %312 = vmatpush1.bf16.msra.mxu0 0
      %313 = vmatprep.subr.bf16.mxu0 0
      %314 = vmatpush1.bf16.msra.mxu0 0
      %315 = vmatprep.subr.bf16.mxu0 0
      %316 = vmatpush1.bf16.msra.mxu0 0
      %317 = vmatprep.subr.bf16.mxu0 0
      %318 = vmatpush1.bf16.msra.mxu0 0
      %319 = vmatprep.subr.bf16.mxu0 0
      %320 = vmatpush1.bf16.msra.mxu0 0
      %321 = vmatprep.subr.bf16.mxu0 0
      %322 = vmatpush1.bf16.msra.mxu0 0
      %323 = vmatprep.subr.bf16.mxu0 0
      %324 = vmatpush1.bf16.msra.mxu0 0
      %325 = vmatprep.subr.bf16.mxu0 0
      %326 = vmatpush1.bf16.msra.mxu0 0
      %327 = vmatprep.subr.bf16.mxu0 0
      %328 = vmatpush1.bf16.msra.mxu0 0
      %329 = vmatprep.mubr.bf16.mxu0 0
      %330 = vmatmul.mubr.bf16.gmra.mrb[0].mxu0 %v295
      %v331 = vpop.f32.mrb[0].mxu0
      %v332 = vadd.f32 0.0, %v331
      %v333 = vpop.f32.mrb[0].mxu0
      %v334 = vpop.f32.mrb[0].mxu0
      %v335 = vpop.f32.mrb[0].mxu0
      %336 = vdwg.mxu0
      %v337 = vld [vmem:[%s261] sm:$0xf]
      %v338 = vld [vmem:[%s261 + $0x4] sm:$0xf]
      %v339 = vld [vmem:[%s261 + $0x8] sm:$0xf]
      %v340 = vld [vmem:[%s261 + $0xc] sm:$0xf]
      %v345 = vunpack.c.l.b16 %v337
      %v346 = vunpack.c.l.b16 %v338
      %v347 = vunpack.c.l.b16 %v339
      %v348 = vunpack.c.l.b16 %v340
      %v349 = vpack.c.b16 %v346, %v345
      %v350 = vpack.c.b16 %v348, %v347
      %353 = vmatprep.subr.bf16.mxu0 0
      %354 = vmatpush1.bf16.msra.mxu0 %v349
      %355 = vmatprep.subr.bf16.mxu0 0
      %356 = vmatpush1.bf16.msra.mxu0 %v350
      %357 = vmatprep.subr.bf16.mxu0 0
      %358 = vmatpush1.bf16.msra.mxu0 0
      %359 = vmatprep.subr.bf16.mxu0 0
      %360 = vmatpush1.bf16.msra.mxu0 0
      %361 = vmatprep.subr.bf16.mxu0 0
      %362 = vmatpush1.bf16.msra.mxu0 0
      %363 = vmatprep.subr.bf16.mxu0 0
      %364 = vmatpush1.bf16.msra.mxu0 0
      %365 = vmatprep.subr.bf16.mxu0 0
      %366 = vmatpush1.bf16.msra.mxu0 0
      %367 = vmatprep.subr.bf16.mxu0 0
      %368 = vmatpush1.bf16.msra.mxu0 0
      %369 = vmatprep.subr.bf16.mxu0 0
      %370 = vmatpush1.bf16.msra.mxu0 0
      %371 = vmatprep.subr.bf16.mxu0 0
      %372 = vmatpush1.bf16.msra.mxu0 0
      %373 = vmatprep.subr.bf16.mxu0 0
      %374 = vmatpush1.bf16.msra.mxu0 0
      %375 = vmatprep.subr.bf16.mxu0 0
      %376 = vmatpush1.bf16.msra.mxu0 0
      %377 = vmatprep.subr.bf16.mxu0 0
      %378 = vmatpush1.bf16.msra.mxu0 0
      %379 = vmatprep.subr.bf16.mxu0 0
      %380 = vmatpush1.bf16.msra.mxu0 0
      %381 = vmatprep.subr.bf16.mxu0 0
      %382 = vmatpush1.bf16.msra.mxu0 0
      %383 = vmatprep.subr.bf16.mxu0 0
      %384 = vmatpush1.bf16.msra.mxu0 0
      %385 = vmatprep.mubr.bf16.mxu0 0
      %386 = vmatmul.mubr.bf16.gmra.mrb[0].mxu0 %v295
      %v387 = vpop.f32.mrb[0].mxu0
      %v388 = vadd.f32 0.0, %v387
      %v389 = vpop.f32.mrb[0].mxu0
      %v390 = vpop.f32.mrb[0].mxu0
      %v391 = vpop.f32.mrb[0].mxu0
      %392 = vdwg.mxu0
      %v393 = vld [vmem:[%s266] sm:$0xf]
      %v394 = vld [vmem:[%s266 + $0x4] sm:$0xf]
      %v395 = vld [vmem:[%s266 + $0x8] sm:$0xf]
      %v396 = vld [vmem:[%s266 + $0xc] sm:$0xf]
      %v401 = vunpack.c.l.b16 %v393
      %v402 = vunpack.c.l.b16 %v394
      %v403 = vunpack.c.l.b16 %v395
      %v404 = vunpack.c.l.b16 %v396
      %v405 = vpack.c.b16 %v402, %v401
      %v406 = vpack.c.b16 %v404, %v403
      %409 = vmatprep.subr.bf16.mxu0 0
      %410 = vmatpush1.bf16.msra.mxu0 %v405
      %411 = vmatprep.subr.bf16.mxu0 0
      %412 = vmatpush1.bf16.msra.mxu0 %v406
      %413 = vmatprep.subr.bf16.mxu0 0
      %414 = vmatpush1.bf16.msra.mxu0 0
      %415 = vmatprep.subr.bf16.mxu0 0
      %416 = vmatpush1.bf16.msra.mxu0 0
      %417 = vmatprep.subr.bf16.mxu0 0
      %418 = vmatpush1.bf16.msra.mxu0 0
      %419 = vmatprep.subr.bf16.mxu0 0
      %420 = vmatpush1.bf16.msra.mxu0 0
      %421 = vmatprep.subr.bf16.mxu0 0
      %422 = vmatpush1.bf16.msra.mxu0 0
      %423 = vmatprep.subr.bf16.mxu0 0
      %424 = vmatpush1.bf16.msra.mxu0 0
      %425 = vmatprep.subr.bf16.mxu0 0
      %426 = vmatpush1.bf16.msra.mxu0 0
      %427 = vmatprep.subr.bf16.mxu0 0
      %428 = vmatpush1.bf16.msra.mxu0 0
      %429 = vmatprep.subr.bf16.mxu0 0
      %430 = vmatpush1.bf16.msra.mxu0 0
      %431 = vmatprep.subr.bf16.mxu0 0
      %432 = vmatpush1.bf16.msra.mxu0 0
      %433 = vmatprep.subr.bf16.mxu0 0
      %434 = vmatpush1.bf16.msra.mxu0 0
      %435 = vmatprep.subr.bf16.mxu0 0
      %436 = vmatpush1.bf16.msra.mxu0 0
      %437 = vmatprep.subr.bf16.mxu0 0
      %438 = vmatpush1.bf16.msra.mxu0 0
      %439 = vmatprep.subr.bf16.mxu0 0
      %440 = vmatpush1.bf16.msra.mxu0 0
      %441 = vmatprep.mubr.bf16.mxu0 0
      %442 = vmatmul.mubr.bf16.gmra.mrb[0].mxu0 %v295
      %v443 = vpop.f32.mrb[0].mxu0
      %v444 = vadd.f32 0.0, %v443
      %v445 = vpop.f32.mrb[0].mxu0
      %v446 = vpop.f32.mrb[0].mxu0
      %v447 = vpop.f32.mrb[0].mxu0
      %448 = vdwg.mxu0
      %v449 = vmul.f32 %v332, 0.5
      %v450 = vpack.c.bf16 %v449, %v449
      %v451 = vpack.c.bf16 %v388, %v388
      %v452 = vpack.c.bf16 %v444, %v444
      %vm453 = vcmask 31744
      %v455 = vsel %vm453, %v450, 0
      %v458 = vsel %vm453, %v451, 0
      %460 = vmatprep.subr.bf16.mxu0 0
      %461 = vmatpush1.bf16.xpose.msra.mxu0 %v458
      %462 = vmatprep.subr.bf16.mxu0 0
      %463 = vmatpush1.bf16.xpose.msra.mxu0 0
      %464 = vmatprep.subr.bf16.mxu0 0
      %465 = vmatpush1.bf16.xpose.msra.mxu0 0
      %466 = vmatprep.subr.bf16.mxu0 0
      %467 = vmatpush1.bf16.xpose.msra.mxu0 0
      %468 = vmatprep.subr.bf16.mxu0 0
      %469 = vmatpush1.bf16.xpose.msra.mxu0 0
      %470 = vmatprep.subr.bf16.mxu0 0
      %471 = vmatpush1.bf16.xpose.msra.mxu0 0
      %472 = vmatprep.subr.bf16.mxu0 0
      %473 = vmatpush1.bf16.xpose.msra.mxu0 0
      %474 = vmatprep.subr.bf16.mxu0 0
      %475 = vmatpush1.bf16.xpose.msra.mxu0 0
      %476 = vmatprep.subr.bf16.mxu0 0
      %477 = vmatpush1.bf16.xpose.msra.mxu0 0
      %478 = vmatprep.subr.bf16.mxu0 0
      %479 = vmatpush1.bf16.xpose.msra.mxu0 0
      %480 = vmatprep.subr.bf16.mxu0 0
      %481 = vmatpush1.bf16.xpose.msra.mxu0 0
      %482 = vmatprep.subr.bf16.mxu0 0
      %483 = vmatpush1.bf16.xpose.msra.mxu0 0
      %484 = vmatprep.subr.bf16.mxu0 0
      %485 = vmatpush1.bf16.xpose.msra.mxu0 0
      %486 = vmatprep.subr.bf16.mxu0 0
      %487 = vmatpush1.bf16.xpose.msra.mxu0 0
      %488 = vmatprep.subr.bf16.mxu0 0
      %489 = vmatpush1.bf16.xpose.msra.mxu0 0
      %490 = vmatprep.subr.bf16.mxu0 0
      %491 = vmatpush1.bf16.xpose.msra.mxu0 0
      %492 = vmatprep.mubr.bf16.mxu0 0
      %493 = vmatmul.mubr.bf16.gmra.mrb[0].mxu0 %v455
      %v494 = vpop.f32.mrb[0].mxu0
      %v495 = vadd.f32 0.0, %v494
      %v496 = vpop.f32.mrb[0].mxu0
      %v497 = vpop.f32.mrb[0].mxu0
      %v498 = vpop.f32.mrb[0].mxu0
      %499 = vdwg.mxu0
      %vm500 = vcmask 64512
      %v501 = vsel %vm500, %v495, -inf
      %502 = vmax.xlane.f32.xlu0 %v501
      %v503 = vpop.xlane.xlu0 %502
      %v504 = vsub.f32 %v495, %v503
      %v505 = vmul.f32 %v504, 1.442695
      %v506 = vpow.pop %v505
      %v507 = vsel %vm500, %v506, 0.0
      %508 = vadd.xlane.f32.xlu0 %v507
      %v509 = vpop.xlane.xlu0 %508
      %v510 = vrcp.pop %v509
      %v511 = vmul.f32 %v506, %v510
      %v512 = vpack.c.bf16 %v511, %v511
      %v514 = vsel %vm500, %v512, 0
      %vm516 = vcmask 1043456
      %v518 = vsel %vm516, %v452, 0
      %520 = vmatprep.subr.bf16.mxu0 0
      %521 = vmatpush1.bf16.msra.mxu0 %v518
      %522 = vmatprep.subr.bf16.mxu0 0
      %523 = vmatpush1.bf16.msra.mxu0 0
      %524 = vmatprep.subr.bf16.mxu0 0
      %525 = vmatpush1.bf16.msra.mxu0 0
      %526 = vmatprep.subr.bf16.mxu0 0
      %527 = vmatpush1.bf16.msra.mxu0 0
      %528 = vmatprep.subr.bf16.mxu0 0
      %529 = vmatpush1.bf16.msra.mxu0 0
      %530 = vmatprep.subr.bf16.mxu0 0
      %531 = vmatpush1.bf16.msra.mxu0 0
      %532 = vmatprep.subr.bf16.mxu0 0
      %533 = vmatpush1.bf16.msra.mxu0 0
      %534 = vmatprep.subr.bf16.mxu0 0
      %535 = vmatpush1.bf16.msra.mxu0 0
      %536 = vmatprep.subr.bf16.mxu0 0
      %537 = vmatpush1.bf16.msra.mxu0 0
      %538 = vmatprep.subr.bf16.mxu0 0
      %539 = vmatpush1.bf16.msra.mxu0 0
      %540 = vmatprep.subr.bf16.mxu0 0
      %541 = vmatpush1.bf16.msra.mxu0 0
      %542 = vmatprep.subr.bf16.mxu0 0
      %543 = vmatpush1.bf16.msra.mxu0 0
      %544 = vmatprep.subr.bf16.mxu0 0
      %545 = vmatpush1.bf16.msra.mxu0 0
      %546 = vmatprep.subr.bf16.mxu0 0
      %547 = vmatpush1.bf16.msra.mxu0 0
      %548 = vmatprep.subr.bf16.mxu0 0
      %549 = vmatpush1.bf16.msra.mxu0 0
      %550 = vmatprep.subr.bf16.mxu0 0
      %551 = vmatpush1.bf16.msra.mxu0 0
      %552 = vmatprep.mubr.bf16.mxu0 0
      %553 = vmatmul.mubr.bf16.gmra.mrb[0].mxu0 %v514
      %v554 = vpop.f32.mrb[0].mxu0
      %v555 = vadd.f32 0.0, %v554
      %v556 = vpop.f32.mrb[0].mxu0
      %v557 = vpop.f32.mrb[0].mxu0
      %v558 = vpop.f32.mrb[0].mxu0
      %559 = vdwg.mxu0
      %v560 = vpack.c.bf16 %v555, %v555
      %vm561 = vcmask 27648
      %562 = vst.msk [vmem:[%s274] sm:$0xf] %vm561, %v560
      %p563 = scmp.lt.s32.totalorder %s19, 1
      %s564 = scalar_select %p563, %s19, 1
      %p565 = scmp.lt.s32.totalorder %s20, 7
      %s566 = scalar_select %p565, %s20, 7
      %s567 = smul.addr %s564, 8
      %s568 = sadd.s32 %s566, %s567
      %s569 = smul.addr %s568, 4
      %s570 = scalar_lea.vmem %s4, %s569
      // Predicated region
      $region37: #{tpu_custom_call.1} parent=35 // pred_check
        %p571 = pneg %p151
      $region38: #{tpu_custom_call.1} parent=35 // pred_check_branch
        %573 = sbr.rel (%p571) target = $region40
      $region39: #{tpu_custom_call.1} parent=35 // pred_region
        _
      $region40: #{tpu_custom_call.1} parent=35 // pred_fallthru
        _
    $region36: #{tpu_custom_call.1} parent=5 // pred_fallthru
      _
    %p574 = scmp.le.s32.totalorder 2, %s10
    // Predicated region
    $region41: #{tpu_custom_call.1} parent=5 // pred_check
      %p575 = pneg %p574
    $region42: #{tpu_custom_call.1} parent=5 // pred_check_branch
      %577 = sbr.rel (%p575) target = $region44
    $region43: #{tpu_custom_call.1} parent=5 // pred_region
      %s578 = ssub.s32 %s10, 2
      // Predicated region
      $region45: #{tpu_custom_call.1} parent=43 // pred_check
        %p579 = pneg %p157
      $region46: #{tpu_custom_call.1} parent=43 // pred_check_branch
        %581 = sbr.rel (%p579) target = $region48
      $region47: #{tpu_custom_call.1} parent=43 // pred_region
        %p582 = scmp.lt.s32.totalorder %s21, 1
        %s583 = scalar_select %p582, %s21, 1
        %p584 = scmp.lt.s32.totalorder %s22, 7
        %s585 = scalar_select %p584, %s22, 7
        %s586 = smul.addr %s583, 8
        %s587 = sadd.s32 %s585, %s586
        %s588 = smul.addr %s587, 4
        %s589 = scalar_lea.vmem %s4, %s588
      $region48: #{tpu_custom_call.1} parent=43 // pred_fallthru
        _
    $region44: #{tpu_custom_call.1} parent=5 // pred_fallthru
      _
  $region6: #{tpu_custom_call.1} parent=0 // loop_footer
    %s14 = sadd.s32 1, %s10
  $region7: #{tpu_custom_call.1} parent=0 // loop_footer_branch
    %9 = sbr.rel target = $region3
  $region8: #{tpu_custom_call.1} parent=0 // loop_exit
    _

</llo_original>
